<compile_context>
chip_gen: v5e
topology: v5e:2x2
jax: 0.10.0
libtpu: 0.0.40
codegen_flags: <defaults>
</compile_context>

<pallas_src>
import jax
import jax.numpy as jnp
from jax.experimental import pallas as pl
from jax.experimental.pallas import tpu as pltpu


def _round_up(x, m):
    return (x + m - 1) // m * m


def co_attention_kernel(xs_ref, xt_ref,
                        wv_s_ref, wv_t_ref,
                        w1s_ref, b1s_ref, w2s_ref, b2s_ref,
                        w1t_ref, b1t_ref, w2t_ref, b2t_ref,
                        gamma_ref, beta_ref,
                        out_s_ref, out_t_ref):
    gamma = gamma_ref[...]                   # (1, D)
    beta = beta_ref[...]                     # (1, D)

    def stream(x_ref, wv_ref, w1_ref, b1_ref, w2_ref, b2_ref, out_ref):
        # ctx = softmax(q k^T / sqrt(D)) @ v over a length-1 key axis == v exactly,
        # so only the Wv projection is materialized (q/k are dead compute).
        ctx = jnp.dot(x_ref[...], wv_ref[...],
                      preferred_element_type=jnp.float32)            # (R, D)
        # FFN: Linear -> ReLU -> Linear (Dropout = identity in eval mode).
        h = jnp.dot(ctx, w1_ref[...],
                    preferred_element_type=jnp.float32) + b1_ref[...]
        h = jnp.maximum(h, 0.0)
        f = jnp.dot(h, w2_ref[...],
                    preferred_element_type=jnp.float32) + b2_ref[...]
        y = f + ctx                                                   # residual
        # LayerNorm(dim, eps=1e-6), biased variance (matches nn.LayerNorm).
        mu = jnp.mean(y, axis=-1, keepdims=True)
        c = y - mu
        var = jnp.mean(c * c, axis=-1, keepdims=True)
        out_ref[...] = c * jax.lax.rsqrt(var + 1e-6) * gamma + beta

    stream(xs_ref, wv_s_ref, w1s_ref, b1s_ref, w2s_ref, b2s_ref, out_s_ref)
    stream(xt_ref, wv_t_ref, w1t_ref, b1t_ref, w2t_ref, b2t_ref, out_t_ref)


def co_attention_forward(seq_s, seq_t, params, *, row_tile=512):
    """co_attention forward. seq_s, seq_t: (B, T, D) float32 -> (att_s, att_t) (B, T, D)."""
    B, T, D = seq_s.shape
    N = B * T

    # Lane-dense 2-D layout done at the XLA boundary (layout plumbing, not kernel work).
    xs = seq_s.reshape(N, D).astype(jnp.float32)
    xt = seq_t.reshape(N, D).astype(jnp.float32)

    # Row tile: multiple of 8 sublanes, capped by the (padded) row count.
    rt = min(row_tile, _round_up(N, 8))
    n_pad = _round_up(N, rt)
    if n_pad != N:
        pad = ((0, n_pad - N), (0, 0))
        xs = jnp.pad(xs, pad)
        xt = jnp.pad(xt, pad)
    grid = (n_pad // rt,)

    # PyTorch Linear weights are (out, in): transpose once here.
    # Wq_* / Wk_* are dead (softmax over a singleton key axis == 1 exactly).
    wv_s, wv_t = params["Wv_s"].T, params["Wv_t"].T
    w1_s, w2_s = params["W1_s"].T, params["W2_s"].T
    w1_t, w2_t = params["W1_t"].T, params["W2_t"].T
    b1_s, b2_s = params["b1_s"].reshape(1, D), params["b2_s"].reshape(1, D)
    b1_t, b2_t = params["b1_t"].reshape(1, D), params["b2_t"].reshape(1, D)
    gamma = params["gamma"].reshape(1, D)
    beta = params["beta"].reshape(1, D)

    row_spec = pl.BlockSpec((rt, D), lambda i: (i, 0))

    def resident(shape):                     # full-array block, kept VMEM-resident
        return pl.BlockSpec(shape, lambda i: (0,) * len(shape))

    # Advisory cost estimate: 3 (rt,D)@(D,D) matmuls per stream per tile + epilogue.
    flops = 12 * n_pad * D * D + 16 * n_pad * D
    bytes_accessed = 4 * (4 * n_pad * D + 6 * D * D + 6 * D)
    cost = pl.CostEstimate(flops=flops, transcendentals=2 * n_pad,
                           bytes_accessed=bytes_accessed)

    out_s, out_t = pl.pallas_call(
        co_attention_kernel,
        out_shape=(jax.ShapeDtypeStruct((n_pad, D), jnp.float32),
                   jax.ShapeDtypeStruct((n_pad, D), jnp.float32)),
        grid=grid,
        in_specs=[
            row_spec, row_spec,                           # xs, xt (tiled over rows)
            resident((D, D)), resident((D, D)),           # Wv_s^T, Wv_t^T
            resident((D, D)), resident((1, D)),           # W1_s, b1_s
            resident((D, D)), resident((1, D)),           # W2_s, b2_s
            resident((D, D)), resident((1, D)),           # W1_t, b1_t
            resident((D, D)), resident((1, D)),           # W2_t, b2_t
            resident((1, D)), resident((1, D)),           # gamma, beta (shared LN)
        ],
        out_specs=(row_spec, row_spec),
        compiler_params=pltpu.CompilerParams(
            dimension_semantics=("parallel",)),           # shard row tiles across TCs
        cost_estimate=cost,
    )(xs, xt, wv_s, wv_t,
      w1_s, b1_s, w2_s, b2_s,
      w1_t, b1_t, w2_t, b2_t,
      gamma, beta)

    return out_s[:N].reshape(B, T, D), out_t[:N].reshape(B, T, D)


def reference_forward(seq_s, seq_t, params):
    """Pure-JAX transcription of the PyTorch co_attention.forward (eval mode),
    including the (mathematically trivial) q/k projections and softmax, so the
    dead-code elimination in the kernel is verified numerically."""
    D = seq_s.shape[-1]
    dim_k = D ** 0.5

    def linear(x, w, b=None):                # PyTorch Linear: x @ W^T (+ b)
        y = jnp.einsum("...i,oi->...o", x, w)
        return y if b is None else y + b

    st = seq_t[:, :, None, :]                # (B, T, 1, D)
    ss = seq_s[:, :, None, :]
    q_s, k_s, v_s = linear(st, params["Wq_s"]), linear(ss, params["Wk_s"]), linear(ss, params["Wv_s"])
    q_t, k_t, v_t = linear(ss, params["Wq_t"]), linear(st, params["Wk_t"]), linear(st, params["Wv_t"])

    coatt_s = jax.nn.softmax(jnp.matmul(q_s / dim_k, jnp.swapaxes(k_s, 2, 3)), axis=-1)
    coatt_t = jax.nn.softmax(jnp.matmul(q_t / dim_k, jnp.swapaxes(k_t, 2, 3)), axis=-1)
    cs = jnp.matmul(coatt_s, v_s)
    ct = jnp.matmul(coatt_t, v_t)

    def ffn(x, w1, b1, w2, b2):              # Dropout = identity in eval mode
        return linear(jax.nn.relu(linear(x, w1, b1)), w2, b2)

    def layer_norm(x, g, b, eps=1e-6):
        mu = jnp.mean(x, axis=-1, keepdims=True)
        var = jnp.mean((x - mu) ** 2, axis=-1, keepdims=True)
        return (x - mu) / jnp.sqrt(var + eps) * g + b

    att_s = layer_norm(ffn(cs, params["W1_s"], params["b1_s"], params["W2_s"], params["b2_s"]) + cs,
                       params["gamma"], params["beta"])
    att_t = layer_norm(ffn(ct, params["W1_t"], params["b1_t"], params["W2_t"], params["b2_t"]) + ct,
                       params["gamma"], params["beta"])
    return att_s[:, :, 0, :], att_t[:, :, 0, :]


if __name__ == "__main__":
    B, T, D = 2, 8, 32      # batch, seq_len, dim

    key = jax.random.PRNGKey(0)
    ks = jax.random.split(key, 18)
    bound = 1.0 / (D ** 0.5)

    def unif(k, shape):
        return jax.random.uniform(k, shape, minval=-bound, maxval=bound, dtype=jnp.float32)

    params = {
        "Wq_s": unif(ks[0], (D, D)), "Wk_s": unif(ks[1], (D, D)), "Wv_s": unif(ks[2], (D, D)),
        "Wq_t": unif(ks[3], (D, D)), "Wk_t": unif(ks[4], (D, D)), "Wv_t": unif(ks[5], (D, D)),
        "W1_s": unif(ks[6], (D, D)), "b1_s": unif(ks[7], (D,)),
        "W2_s": unif(ks[8], (D, D)), "b2_s": unif(ks[9], (D,)),
        "W1_t": unif(ks[10], (D, D)), "b1_t": unif(ks[11], (D,)),
        "W2_t": unif(ks[12], (D, D)), "b2_t": unif(ks[13], (D,)),
        "gamma": 1.0 + 0.1 * jax.random.normal(ks[14], (D,), dtype=jnp.float32),
        "beta": 0.1 * jax.random.normal(ks[15], (D,), dtype=jnp.float32),
    }
    seq_s = jax.random.normal(ks[16], (B, T, D), dtype=jnp.float32)
    seq_t = jax.random.normal(ks[17], (B, T, D), dtype=jnp.float32)

    out_s, out_t = co_attention_forward(seq_s, seq_t, params)
    out_s, out_t = jax.block_until_ready((out_s, out_t))

    ref_s, ref_t = reference_forward(seq_s, seq_t, params)
    assert out_s.shape == (B, T, D) and out_t.shape == (B, T, D)
    assert jnp.allclose(out_s, ref_s, atol=1e-4, rtol=1e-4), "att_s mismatch vs. reference"
    assert jnp.allclose(out_t, ref_t, atol=1e-4, rtol=1e-4), "att_t mismatch vs. reference"

    print("KERNEL_OK")
</pallas_src>

<mosaic_0001>
module attributes {stable_mosaic.version = 11 : i64} {
  func.func @co_attention_kernel(%arg0: i32, %arg1: memref<16x32xf32, #tpu.memory_space<vmem>>, %arg2: memref<16x32xf32, #tpu.memory_space<vmem>>, %arg3: memref<32x32xf32, #tpu.memory_space<vmem>>, %arg4: memref<32x32xf32, #tpu.memory_space<vmem>>, %arg5: memref<32x32xf32, #tpu.memory_space<vmem>>, %arg6: memref<1x32xf32, #tpu.memory_space<vmem>>, %arg7: memref<32x32xf32, #tpu.memory_space<vmem>>, %arg8: memref<1x32xf32, #tpu.memory_space<vmem>>, %arg9: memref<32x32xf32, #tpu.memory_space<vmem>>, %arg10: memref<1x32xf32, #tpu.memory_space<vmem>>, %arg11: memref<32x32xf32, #tpu.memory_space<vmem>>, %arg12: memref<1x32xf32, #tpu.memory_space<vmem>>, %arg13: memref<1x32xf32, #tpu.memory_space<vmem>>, %arg14: memref<1x32xf32, #tpu.memory_space<vmem>>, %arg15: memref<16x32xf32, #tpu.memory_space<vmem>>, %arg16: memref<16x32xf32, #tpu.memory_space<vmem>>) attributes {dimension_semantics = [#tpu.dimension_semantics<parallel>], iteration_bounds = array<i64: 1>, scalar_prefetch = 0 : i64, scratch_operands = 0 : i64, tpu.core_type = #tpu.core_type<tc>, window_params = [{transform_indices = @transform_0, window_bounds = array<i64: 16, 32>}, {transform_indices = @transform_1, window_bounds = array<i64: 16, 32>}, {pipeline_mode = #tpu.pipeline_mode<synchronous>, transform_indices = @transform_2, window_bounds = array<i64: 32, 32>}, {pipeline_mode = #tpu.pipeline_mode<synchronous>, transform_indices = @transform_3, window_bounds = array<i64: 32, 32>}, {pipeline_mode = #tpu.pipeline_mode<synchronous>, transform_indices = @transform_4, window_bounds = array<i64: 32, 32>}, {pipeline_mode = #tpu.pipeline_mode<synchronous>, transform_indices = @transform_5, window_bounds = array<i64: 1, 32>}, {pipeline_mode = #tpu.pipeline_mode<synchronous>, transform_indices = @transform_6, window_bounds = array<i64: 32, 32>}, {pipeline_mode = #tpu.pipeline_mode<synchronous>, transform_indices = @transform_7, window_bounds = array<i64: 1, 32>}, {pipeline_mode = #tpu.pipeline_mode<synchronous>, transform_indices = @transform_8, window_bounds = array<i64: 32, 32>}, {pipeline_mode = #tpu.pipeline_mode<synchronous>, transform_indices = @transform_9, window_bounds = array<i64: 1, 32>}, {pipeline_mode = #tpu.pipeline_mode<synchronous>, transform_indices = @transform_10, window_bounds = array<i64: 32, 32>}, {pipeline_mode = #tpu.pipeline_mode<synchronous>, transform_indices = @transform_11, window_bounds = array<i64: 1, 32>}, {pipeline_mode = #tpu.pipeline_mode<synchronous>, transform_indices = @transform_12, window_bounds = array<i64: 1, 32>}, {pipeline_mode = #tpu.pipeline_mode<synchronous>, transform_indices = @transform_13, window_bounds = array<i64: 1, 32>}, {transform_indices = @transform_14, window_bounds = array<i64: 16, 32>}, {transform_indices = @transform_15, window_bounds = array<i64: 16, 32>}]} {
    %c0 = arith.constant 0 : index
    %c0_0 = arith.constant 0 : index
    %0 = vector.load %arg13[%c0, %c0_0] : memref<1x32xf32, #tpu.memory_space<vmem>>, vector<1x32xf32>
    %c0_1 = arith.constant 0 : index
    %c0_2 = arith.constant 0 : index
    %1 = vector.load %arg14[%c0_1, %c0_2] : memref<1x32xf32, #tpu.memory_space<vmem>>, vector<1x32xf32>
    %c0_3 = arith.constant 0 : index
    %c0_4 = arith.constant 0 : index
    %2 = vector.load %arg1[%c0_3, %c0_4] : memref<16x32xf32, #tpu.memory_space<vmem>>, vector<16x32xf32>
    %c0_5 = arith.constant 0 : index
    %c0_6 = arith.constant 0 : index
    %3 = vector.load %arg3[%c0_5, %c0_6] : memref<32x32xf32, #tpu.memory_space<vmem>>, vector<32x32xf32>
    %cst = arith.constant dense<0.000000e+00> : vector<16x32xf32>
    %4 = tpu.matmul %2, %3, %cst {dimension_numbers = #tpu.dot_dimension_numbers<[1], [0], [0], [1], [0, 0, 1, 1], [], []>} : vector<16x32xf32>, vector<32x32xf32>, vector<16x32xf32> -> vector<16x32xf32>
    %c0_7 = arith.constant 0 : index
    %c0_8 = arith.constant 0 : index
    %5 = vector.load %arg5[%c0_7, %c0_8] : memref<32x32xf32, #tpu.memory_space<vmem>>, vector<32x32xf32>
    %cst_9 = arith.constant dense<0.000000e+00> : vector<16x32xf32>
    %6 = tpu.matmul %4, %5, %cst_9 {dimension_numbers = #tpu.dot_dimension_numbers<[1], [0], [0], [1], [0, 0, 1, 1], [], []>} : vector<16x32xf32>, vector<32x32xf32>, vector<16x32xf32> -> vector<16x32xf32>
    %c0_10 = arith.constant 0 : index
    %c0_11 = arith.constant 0 : index
    %7 = vector.load %arg6[%c0_10, %c0_11] : memref<1x32xf32, #tpu.memory_space<vmem>>, vector<1x32xf32>
    %8 = vector.broadcast %7 : vector<1x32xf32> to vector<16x32xf32>
    %9 = arith.addf %6, %8 : vector<16x32xf32>
    %cst_12 = arith.constant 0.000000e+00 : f32
    %10 = vector.broadcast %cst_12 : f32 to vector<16x32xf32>
    %11 = arith.maximumf %9, %10 : vector<16x32xf32>
    %c0_13 = arith.constant 0 : index
    %c0_14 = arith.constant 0 : index
    %12 = vector.load %arg7[%c0_13, %c0_14] : memref<32x32xf32, #tpu.memory_space<vmem>>, vector<32x32xf32>
    %cst_15 = arith.constant dense<0.000000e+00> : vector<16x32xf32>
    %13 = tpu.matmul %11, %12, %cst_15 {dimension_numbers = #tpu.dot_dimension_numbers<[1], [0], [0], [1], [0, 0, 1, 1], [], []>} : vector<16x32xf32>, vector<32x32xf32>, vector<16x32xf32> -> vector<16x32xf32>
    %c0_16 = arith.constant 0 : index
    %c0_17 = arith.constant 0 : index
    %14 = vector.load %arg8[%c0_16, %c0_17] : memref<1x32xf32, #tpu.memory_space<vmem>>, vector<1x32xf32>
    %15 = vector.broadcast %14 : vector<1x32xf32> to vector<16x32xf32>
    %16 = arith.addf %13, %15 : vector<16x32xf32>
    %17 = arith.addf %16, %4 : vector<16x32xf32>
    %cst_18 = arith.constant dense<0.000000e+00> : vector<16xf32>
    %18 = vector.multi_reduction <add>, %17, %cst_18 [1] : vector<16x32xf32> to vector<16xf32>
    %19 = vector.shape_cast %18 : vector<16xf32> to vector<16x1xf32>
    %cst_19 = arith.constant 3.200000e+01 : f32
    %20 = vector.broadcast %cst_19 : f32 to vector<16x1xf32>
    %21 = arith.divf %19, %20 : vector<16x1xf32>
    %22 = vector.broadcast %21 : vector<16x1xf32> to vector<16x32xf32>
    %23 = arith.subf %17, %22 : vector<16x32xf32>
    %24 = arith.mulf %23, %23 : vector<16x32xf32>
    %cst_20 = arith.constant dense<0.000000e+00> : vector<16xf32>
    %25 = vector.multi_reduction <add>, %24, %cst_20 [1] : vector<16x32xf32> to vector<16xf32>
    %26 = vector.shape_cast %25 : vector<16xf32> to vector<16x1xf32>
    %cst_21 = arith.constant 3.200000e+01 : f32
    %27 = vector.broadcast %cst_21 : f32 to vector<16x1xf32>
    %28 = arith.divf %26, %27 : vector<16x1xf32>
    %cst_22 = arith.constant 9.99999997E-7 : f32
    %29 = vector.broadcast %cst_22 : f32 to vector<16x1xf32>
    %30 = arith.addf %28, %29 : vector<16x1xf32>
    %31 = math.rsqrt %30 : vector<16x1xf32>
    %32 = vector.broadcast %31 : vector<16x1xf32> to vector<16x32xf32>
    %33 = arith.mulf %23, %32 : vector<16x32xf32>
    %34 = vector.broadcast %0 : vector<1x32xf32> to vector<16x32xf32>
    %35 = arith.mulf %33, %34 : vector<16x32xf32>
    %36 = vector.broadcast %1 : vector<1x32xf32> to vector<16x32xf32>
    %37 = arith.addf %35, %36 : vector<16x32xf32>
    %c0_23 = arith.constant 0 : index
    %c0_24 = arith.constant 0 : index
    %38 = vector.load %arg15[%c0_23, %c0_24] : memref<16x32xf32, #tpu.memory_space<vmem>>, vector<16x32xf32>
    tpu.vector_store %arg15[%c0_23, %c0_24], %37 {strides = array<i32>} : memref<16x32xf32, #tpu.memory_space<vmem>>, vector<16x32xf32>,
    %c0_25 = arith.constant 0 : index
    %c0_26 = arith.constant 0 : index
    %39 = vector.load %arg2[%c0_25, %c0_26] : memref<16x32xf32, #tpu.memory_space<vmem>>, vector<16x32xf32>
    %c0_27 = arith.constant 0 : index
    %c0_28 = arith.constant 0 : index
    %40 = vector.load %arg4[%c0_27, %c0_28] : memref<32x32xf32, #tpu.memory_space<vmem>>, vector<32x32xf32>
    %cst_29 = arith.constant dense<0.000000e+00> : vector<16x32xf32>
    %41 = tpu.matmul %39, %40, %cst_29 {dimension_numbers = #tpu.dot_dimension_numbers<[1], [0], [0], [1], [0, 0, 1, 1], [], []>} : vector<16x32xf32>, vector<32x32xf32>, vector<16x32xf32> -> vector<16x32xf32>
    %c0_30 = arith.constant 0 : index
    %c0_31 = arith.constant 0 : index
    %42 = vector.load %arg9[%c0_30, %c0_31] : memref<32x32xf32, #tpu.memory_space<vmem>>, vector<32x32xf32>
    %cst_32 = arith.constant dense<0.000000e+00> : vector<16x32xf32>
    %43 = tpu.matmul %41, %42, %cst_32 {dimension_numbers = #tpu.dot_dimension_numbers<[1], [0], [0], [1], [0, 0, 1, 1], [], []>} : vector<16x32xf32>, vector<32x32xf32>, vector<16x32xf32> -> vector<16x32xf32>
    %c0_33 = arith.constant 0 : index
    %c0_34 = arith.constant 0 : index
    %44 = vector.load %arg10[%c0_33, %c0_34] : memref<1x32xf32, #tpu.memory_space<vmem>>, vector<1x32xf32>
    %45 = vector.broadcast %44 : vector<1x32xf32> to vector<16x32xf32>
    %46 = arith.addf %43, %45 : vector<16x32xf32>
    %cst_35 = arith.constant 0.000000e+00 : f32
    %47 = vector.broadcast %cst_35 : f32 to vector<16x32xf32>
    %48 = arith.maximumf %46, %47 : vector<16x32xf32>
    %c0_36 = arith.constant 0 : index
    %c0_37 = arith.constant 0 : index
    %49 = vector.load %arg11[%c0_36, %c0_37] : memref<32x32xf32, #tpu.memory_space<vmem>>, vector<32x32xf32>
    %cst_38 = arith.constant dense<0.000000e+00> : vector<16x32xf32>
    %50 = tpu.matmul %48, %49, %cst_38 {dimension_numbers = #tpu.dot_dimension_numbers<[1], [0], [0], [1], [0, 0, 1, 1], [], []>} : vector<16x32xf32>, vector<32x32xf32>, vector<16x32xf32> -> vector<16x32xf32>
    %c0_39 = arith.constant 0 : index
    %c0_40 = arith.constant 0 : index
    %51 = vector.load %arg12[%c0_39, %c0_40] : memref<1x32xf32, #tpu.memory_space<vmem>>, vector<1x32xf32>
    %52 = vector.broadcast %51 : vector<1x32xf32> to vector<16x32xf32>
    %53 = arith.addf %50, %52 : vector<16x32xf32>
    %54 = arith.addf %53, %41 : vector<16x32xf32>
    %cst_41 = arith.constant dense<0.000000e+00> : vector<16xf32>
    %55 = vector.multi_reduction <add>, %54, %cst_41 [1] : vector<16x32xf32> to vector<16xf32>
    %56 = vector.shape_cast %55 : vector<16xf32> to vector<16x1xf32>
    %cst_42 = arith.constant 3.200000e+01 : f32
    %57 = vector.broadcast %cst_42 : f32 to vector<16x1xf32>
    %58 = arith.divf %56, %57 : vector<16x1xf32>
    %59 = vector.broadcast %58 : vector<16x1xf32> to vector<16x32xf32>
    %60 = arith.subf %54, %59 : vector<16x32xf32>
    %61 = arith.mulf %60, %60 : vector<16x32xf32>
    %cst_43 = arith.constant dense<0.000000e+00> : vector<16xf32>
    %62 = vector.multi_reduction <add>, %61, %cst_43 [1] : vector<16x32xf32> to vector<16xf32>
    %63 = vector.shape_cast %62 : vector<16xf32> to vector<16x1xf32>
    %cst_44 = arith.constant 3.200000e+01 : f32
    %64 = vector.broadcast %cst_44 : f32 to vector<16x1xf32>
    %65 = arith.divf %63, %64 : vector<16x1xf32>
    %cst_45 = arith.constant 9.99999997E-7 : f32
    %66 = vector.broadcast %cst_45 : f32 to vector<16x1xf32>
    %67 = arith.addf %65, %66 : vector<16x1xf32>
    %68 = math.rsqrt %67 : vector<16x1xf32>
    %69 = vector.broadcast %68 : vector<16x1xf32> to vector<16x32xf32>
    %70 = arith.mulf %60, %69 : vector<16x32xf32>
    %71 = vector.broadcast %0 : vector<1x32xf32> to vector<16x32xf32>
    %72 = arith.mulf %70, %71 : vector<16x32xf32>
    %73 = vector.broadcast %1 : vector<1x32xf32> to vector<16x32xf32>
    %74 = arith.addf %72, %73 : vector<16x32xf32>
    %c0_46 = arith.constant 0 : index
    %c0_47 = arith.constant 0 : index
    %75 = vector.load %arg16[%c0_46, %c0_47] : memref<16x32xf32, #tpu.memory_space<vmem>>, vector<16x32xf32>
    tpu.vector_store %arg16[%c0_46, %c0_47], %74 {strides = array<i32>} : memref<16x32xf32, #tpu.memory_space<vmem>>, vector<16x32xf32>,
    return
  }
  func.func @transform_0(%arg0: i32) -> (i32, i32) {
    %c0_i32 = arith.constant 0 : i32
    %c0_i32_0 = arith.constant 0 : i32
    return %arg0, %c0_i32 : i32, i32
  }
  func.func @transform_1(%arg0: i32) -> (i32, i32) {
    %c0_i32 = arith.constant 0 : i32
    %c0_i32_0 = arith.constant 0 : i32
    return %arg0, %c0_i32 : i32, i32
  }
  func.func @transform_2(%arg0: i32) -> (i32, i32) {
    %c0_i32 = arith.constant 0 : i32
    %c0_i32_0 = arith.constant 0 : i32
    %c0_i32_1 = arith.constant 0 : i32
    return %c0_i32, %c0_i32_0 : i32, i32
  }
  func.func @transform_3(%arg0: i32) -> (i32, i32) {
    %c0_i32 = arith.constant 0 : i32
    %c0_i32_0 = arith.constant 0 : i32
    %c0_i32_1 = arith.constant 0 : i32
    return %c0_i32, %c0_i32_0 : i32, i32
  }
  func.func @transform_4(%arg0: i32) -> (i32, i32) {
    %c0_i32 = arith.constant 0 : i32
    %c0_i32_0 = arith.constant 0 : i32
    %c0_i32_1 = arith.constant 0 : i32
    return %c0_i32, %c0_i32_0 : i32, i32
  }
  func.func @transform_5(%arg0: i32) -> (i32, i32) {
    %c0_i32 = arith.constant 0 : i32
    %c0_i32_0 = arith.constant 0 : i32
    %c0_i32_1 = arith.constant 0 : i32
    return %c0_i32, %c0_i32_0 : i32, i32
  }
  func.func @transform_6(%arg0: i32) -> (i32, i32) {
    %c0_i32 = arith.constant 0 : i32
    %c0_i32_0 = arith.constant 0 : i32
    %c0_i32_1 = arith.constant 0 : i32
    return %c0_i32, %c0_i32_0 : i32, i32
  }
  func.func @transform_7(%arg0: i32) -> (i32, i32) {
    %c0_i32 = arith.constant 0 : i32
    %c0_i32_0 = arith.constant 0 : i32
    %c0_i32_1 = arith.constant 0 : i32
    return %c0_i32, %c0_i32_0 : i32, i32
  }
  func.func @transform_8(%arg0: i32) -> (i32, i32) {
    %c0_i32 = arith.constant 0 : i32
    %c0_i32_0 = arith.constant 0 : i32
    %c0_i32_1 = arith.constant 0 : i32
    return %c0_i32, %c0_i32_0 : i32, i32
  }
  func.func @transform_9(%arg0: i32) -> (i32, i32) {
    %c0_i32 = arith.constant 0 : i32
    %c0_i32_0 = arith.constant 0 : i32
    %c0_i32_1 = arith.constant 0 : i32
    return %c0_i32, %c0_i32_0 : i32, i32
  }
  func.func @transform_10(%arg0: i32) -> (i32, i32) {
    %c0_i32 = arith.constant 0 : i32
    %c0_i32_0 = arith.constant 0 : i32
    %c0_i32_1 = arith.constant 0 : i32
    return %c0_i32, %c0_i32_0 : i32, i32
  }
  func.func @transform_11(%arg0: i32) -> (i32, i32) {
    %c0_i32 = arith.constant 0 : i32
    %c0_i32_0 = arith.constant 0 : i32
    %c0_i32_1 = arith.constant 0 : i32
    return %c0_i32, %c0_i32_0 : i32, i32
  }
  func.func @transform_12(%arg0: i32) -> (i32, i32) {
    %c0_i32 = arith.constant 0 : i32
    %c0_i32_0 = arith.constant 0 : i32
    %c0_i32_1 = arith.constant 0 : i32
    return %c0_i32, %c0_i32_0 : i32, i32
  }
  func.func @transform_13(%arg0: i32) -> (i32, i32) {
    %c0_i32 = arith.constant 0 : i32
    %c0_i32_0 = arith.constant 0 : i32
    %c0_i32_1 = arith.constant 0 : i32
    return %c0_i32, %c0_i32_0 : i32, i32
  }
  func.func @transform_14(%arg0: i32) -> (i32, i32) {
    %c0_i32 = arith.constant 0 : i32
    %c0_i32_0 = arith.constant 0 : i32
    return %arg0, %c0_i32 : i32, i32
  }
  func.func @transform_15(%arg0: i32) -> (i32, i32) {
    %c0_i32 = arith.constant 0 : i32
    %c0_i32_0 = arith.constant 0 : i32
    return %arg0, %c0_i32 : i32, i32
  }
}

</mosaic_0001>

<llo_original>
// kernel: tpu_custom_call.1
$region0: #{tpu_custom_call.1}
  #allocation0 [shape = 'u32[]', space=smem, size = 0x4, offset = 0x4, fixed_abs, tag = 'smem constant byte address 0x4 - core index']
  #allocation1 [shape = 'u32[72,128]{1,0:T(1,128)}', space=vmem, size = 0x9000, scoped, tag = 'internal scratch']
  %s0 = inlined_call_operand.hbm [shape: f32[16,32], index: 0, kind: input, shape index: {}]
  %s1 = inlined_call_operand.hbm [shape: f32[16,32], index: 1, kind: input, shape index: {}]
  %s2 = inlined_call_operand.hbm [shape: f32[32,32], index: 2, kind: input, shape index: {}]
  %s3 = inlined_call_operand.hbm [shape: f32[32,32], index: 3, kind: input, shape index: {}]
  %s4 = inlined_call_operand.hbm [shape: f32[32,32], index: 4, kind: input, shape index: {}]
  %s5 = inlined_call_operand.vmem [shape: f32[1,32], index: 5, kind: input, shape index: {}]
  %s6 = inlined_call_operand.hbm [shape: f32[32,32], index: 6, kind: input, shape index: {}]
  %s7 = inlined_call_operand.vmem [shape: f32[1,32], index: 7, kind: input, shape index: {}]
  %s8 = inlined_call_operand.hbm [shape: f32[32,32], index: 8, kind: input, shape index: {}]
  %s9 = inlined_call_operand.vmem [shape: f32[1,32], index: 9, kind: input, shape index: {}]
  %s10 = inlined_call_operand.hbm [shape: f32[32,32], index: 10, kind: input, shape index: {}]
  %s11 = inlined_call_operand.vmem [shape: f32[1,32], index: 11, kind: input, shape index: {}]
  %s12 = inlined_call_operand.vmem [shape: f32[1,32], index: 12, kind: input, shape index: {}]
  %s13 = inlined_call_operand.vmem [shape: f32[1,32], index: 13, kind: input, shape index: {}]
  %s14 = inlined_call_operand.hbm [shape: f32[16,32], index: 14, kind: output, shape index: {0}]
  %s15 = inlined_call_operand.hbm [shape: f32[16,32], index: 15, kind: output, shape index: {1}]
  %16 = xla_tuple %s14, %s15
  %s17 = sld [smem:[#allocation0]]
  $region106: #{tpu_custom_call.1} parent=0
    _
  %s19 = ssub.s32 1, %s17
  %s20 = scalar_select 0, %s19, %s17
  $region1: #{tpu_custom_call.1} parent=0
    #allocation2 [shape = 'u8[8192]{0}', space=vmem, size = 0x2000, scoped, tag = 'input window, operand 0, single buffered']
    #allocation3 [shape = 's32[1]{0}', space=sflag, size = 0x4, scoped, tag = 'scoped memory for tpu_custom_call.1']
    #allocation4 [shape = 's32[1]{0}', space=sflag, size = 0x4, scoped, tag = 'scoped memory for tpu_custom_call.1']
    #allocation5 [shape = 'u8[8192]{0}', space=vmem, size = 0x2000, scoped, tag = 'input window, operand 1, single buffered']
    #allocation6 [shape = 's32[1]{0}', space=sflag, size = 0x4, scoped, tag = 'scoped memory for tpu_custom_call.1']
    #allocation7 [shape = 'u8[16384]{0}', space=vmem, size = 0x4000, scoped, tag = 'input window, operand 2, single buffered']
    #allocation8 [shape = 'u8[16384]{0}', space=vmem, size = 0x4000, scoped, tag = 'input window, operand 3, single buffered']
    #allocation9 [shape = 's32[1]{0}', space=sflag, size = 0x4, scoped, tag = 'scoped memory for tpu_custom_call.1']
    #allocation10 [shape = 'u8[16384]{0}', space=vmem, size = 0x4000, scoped, tag = 'input window, operand 4, single buffered']
    #allocation11 [shape = 'u8[16384]{0}', space=vmem, size = 0x4000, scoped, tag = 'input window, operand 6, single buffered']
    #allocation12 [shape = 's32[1]{0}', space=sflag, size = 0x4, scoped, tag = 'scoped memory for tpu_custom_call.1']
    #allocation13 [shape = 'u8[16384]{0}', space=vmem, size = 0x4000, scoped, tag = 'input window, operand 8, single buffered']
    #allocation14 [shape = 'u8[16384]{0}', space=vmem, size = 0x4000, scoped, tag = 'input window, operand 10, single buffered']
    #allocation15 [shape = 's32[1]{0}', space=sflag, size = 0x4, scoped, tag = 'scoped memory for tpu_custom_call.1']
    #allocation16 [shape = 'u8[8192]{0}', space=vmem, size = 0x2000, scoped, tag = 'output window, operand 0, single buffered']
    #allocation17 [shape = 'u8[8192]{0}', space=vmem, size = 0x2000, scoped, tag = 'output window, operand 1, single buffered']
    #allocation18 [shape = 's32[1]{0}', space=sflag, size = 0x4, scoped, tag = 'scoped memory for tpu_custom_call.1']
    %21 = vsyncpa [#allocation3], 0
    %22 = vsyncpa [#allocation6], 0
    %23 = vsyncpa [#allocation9], 0
    %24 = vsyncpa [#allocation12], 0
    %25 = vsyncpa [#allocation15], 0
    %26 = vsyncpa [#allocation4], 0
    %27 = vsyncpa [#allocation18], 0
    // Predicated region
    $region2: #{tpu_custom_call.1} parent=1 // pred_check
      _
    $region3: #{tpu_custom_call.1} parent=1 // pred_check_branch
      %29 = sbr.rel (0) target = $region5
    $region4: #{tpu_custom_call.1} parent=1 // pred_region
      %31 = vsyncadd [#allocation3], 0
      %s32 = sshll.u32 %s0, 4
      %s33 = int_to_ptr.hbm [resolvable:$true] %s32
      %s34 = sshll.u32 [#allocation2], 4
      %s35 = int_to_ptr.vmem [resolvable:$true] %s34
      %40 = dma.hbm_to_vmem [thread:$0]  %s33, 256, %s35, [#allocation3], 128, 128, 8
    $region5: #{tpu_custom_call.1} parent=1 // pred_fallthru
      _
    // Predicated region
    $region6: #{tpu_custom_call.1} parent=1 // pred_check
      _
    $region7: #{tpu_custom_call.1} parent=1 // pred_check_branch
      %42 = sbr.rel (0) target = $region9
    $region8: #{tpu_custom_call.1} parent=1 // pred_region
      %44 = vsyncadd [#allocation6], 0
      %s45 = sshll.u32 %s1, 4
      %s46 = int_to_ptr.hbm [resolvable:$true] %s45
      %s47 = sshll.u32 [#allocation5], 4
      %s48 = int_to_ptr.vmem [resolvable:$true] %s47
      %53 = dma.hbm_to_vmem [thread:$0]  %s46, 256, %s48, [#allocation6], 128, 128, 8
    $region9: #{tpu_custom_call.1} parent=1 // pred_fallthru
      _
    // Predicated region
    $region10: #{tpu_custom_call.1} parent=1 // pred_check
      _
    $region11: #{tpu_custom_call.1} parent=1 // pred_check_branch
      %55 = sbr.rel (0) target = $region13
    $region12: #{tpu_custom_call.1} parent=1 // pred_region
      %57 = vsyncadd [#allocation6], 0
      %s58 = sshll.u32 %s2, 4
      %s59 = int_to_ptr.hbm [resolvable:$true] %s58
      %s60 = sshll.u32 [#allocation7], 4
      %s61 = int_to_ptr.vmem [resolvable:$true] %s60
      %66 = dma.hbm_to_vmem [thread:$0]  %s59, 512, %s61, [#allocation6], 128, 128, 8
    $region13: #{tpu_custom_call.1} parent=1 // pred_fallthru
      _
    // Predicated region
    $region14: #{tpu_custom_call.1} parent=1 // pred_check
      _
    $region15: #{tpu_custom_call.1} parent=1 // pred_check_branch
      %68 = sbr.rel (0) target = $region17
    $region16: #{tpu_custom_call.1} parent=1 // pred_region
      %70 = vsyncadd [#allocation9], 0
      %s71 = sshll.u32 %s3, 4
      %s72 = int_to_ptr.hbm [resolvable:$true] %s71
      %s73 = sshll.u32 [#allocation8], 4
      %s74 = int_to_ptr.vmem [resolvable:$true] %s73
      %79 = dma.hbm_to_vmem [thread:$0]  %s72, 512, %s74, [#allocation9], 128, 128, 8
    $region17: #{tpu_custom_call.1} parent=1 // pred_fallthru
      _
    // Predicated region
    $region18: #{tpu_custom_call.1} parent=1 // pred_check
      _
    $region19: #{tpu_custom_call.1} parent=1 // pred_check_branch
      %81 = sbr.rel (0) target = $region21
    $region20: #{tpu_custom_call.1} parent=1 // pred_region
      %83 = vsyncadd [#allocation9], 0
      %s84 = sshll.u32 %s4, 4
      %s85 = int_to_ptr.hbm [resolvable:$true] %s84
      %s86 = sshll.u32 [#allocation10], 4
      %s87 = int_to_ptr.vmem [resolvable:$true] %s86
      %92 = dma.hbm_to_vmem [thread:$0]  %s85, 512, %s87, [#allocation9], 128, 128, 8
    $region21: #{tpu_custom_call.1} parent=1 // pred_fallthru
      _
    // Predicated region
    $region22: #{tpu_custom_call.1} parent=1 // pred_check
      _
    $region23: #{tpu_custom_call.1} parent=1 // pred_check_branch
      %94 = sbr.rel (0) target = $region25
    $region24: #{tpu_custom_call.1} parent=1 // pred_region
      _
    $region25: #{tpu_custom_call.1} parent=1 // pred_fallthru
      _
    // Predicated region
    $region26: #{tpu_custom_call.1} parent=1 // pred_check
      _
    $region27: #{tpu_custom_call.1} parent=1 // pred_check_branch
      %96 = sbr.rel (0) target = $region29
    $region28: #{tpu_custom_call.1} parent=1 // pred_region
      %98 = vsyncadd [#allocation12], 0
      %s99 = sshll.u32 %s6, 4
      %s100 = int_to_ptr.hbm [resolvable:$true] %s99
      %s101 = sshll.u32 [#allocation11], 4
      %s102 = int_to_ptr.vmem [resolvable:$true] %s101
      %107 = dma.hbm_to_vmem [thread:$0]  %s100, 512, %s102, [#allocation12], 128, 128, 8
    $region29: #{tpu_custom_call.1} parent=1 // pred_fallthru
      _
    // Predicated region
    $region30: #{tpu_custom_call.1} parent=1 // pred_check
      _
    $region31: #{tpu_custom_call.1} parent=1 // pred_check_branch
      %109 = sbr.rel (0) target = $region33
    $region32: #{tpu_custom_call.1} parent=1 // pred_region
      _
    $region33: #{tpu_custom_call.1} parent=1 // pred_fallthru
      _
    // Predicated region
    $region34: #{tpu_custom_call.1} parent=1 // pred_check
      _
    $region35: #{tpu_custom_call.1} parent=1 // pred_check_branch
      %111 = sbr.rel (0) target = $region37
    $region36: #{tpu_custom_call.1} parent=1 // pred_region
      %113 = vsyncadd [#allocation12], 0
      %s114 = sshll.u32 %s8, 4
      %s115 = int_to_ptr.hbm [resolvable:$true] %s114
      %s116 = sshll.u32 [#allocation13], 4
      %s117 = int_to_ptr.vmem [resolvable:$true] %s116
      %122 = dma.hbm_to_vmem [thread:$0]  %s115, 512, %s117, [#allocation12], 128, 128, 8
    $region37: #{tpu_custom_call.1} parent=1 // pred_fallthru
      _
    // Predicated region
    $region38: #{tpu_custom_call.1} parent=1 // pred_check
      _
    $region39: #{tpu_custom_call.1} parent=1 // pred_check_branch
      %124 = sbr.rel (0) target = $region41
    $region40: #{tpu_custom_call.1} parent=1 // pred_region
      _
    $region41: #{tpu_custom_call.1} parent=1 // pred_fallthru
      _
    // Predicated region
    $region42: #{tpu_custom_call.1} parent=1 // pred_check
      _
    $region43: #{tpu_custom_call.1} parent=1 // pred_check_branch
      %126 = sbr.rel (0) target = $region45
    $region44: #{tpu_custom_call.1} parent=1 // pred_region
      %128 = vsyncadd [#allocation15], 0
      %s129 = sshll.u32 %s10, 4
      %s130 = int_to_ptr.hbm [resolvable:$true] %s129
      %s131 = sshll.u32 [#allocation14], 4
      %s132 = int_to_ptr.vmem [resolvable:$true] %s131
      %137 = dma.hbm_to_vmem [thread:$0]  %s130, 512, %s132, [#allocation15], 128, 128, 8
    $region45: #{tpu_custom_call.1} parent=1 // pred_fallthru
      _
    // Predicated region
    $region46: #{tpu_custom_call.1} parent=1 // pred_check
      _
    $region47: #{tpu_custom_call.1} parent=1 // pred_check_branch
      %139 = sbr.rel (0) target = $region49
    $region48: #{tpu_custom_call.1} parent=1 // pred_region
      _
    $region49: #{tpu_custom_call.1} parent=1 // pred_fallthru
      _
    // Predicated region
    $region50: #{tpu_custom_call.1} parent=1 // pred_check
      _
    $region51: #{tpu_custom_call.1} parent=1 // pred_check_branch
      %141 = sbr.rel (0) target = $region53
    $region52: #{tpu_custom_call.1} parent=1 // pred_region
      _
    $region53: #{tpu_custom_call.1} parent=1 // pred_fallthru
      _
    // Predicated region
    $region54: #{tpu_custom_call.1} parent=1 // pred_check
      _
    $region55: #{tpu_custom_call.1} parent=1 // pred_check_branch
      %143 = sbr.rel (0) target = $region57
    $region56: #{tpu_custom_call.1} parent=1 // pred_region
      _
    $region57: #{tpu_custom_call.1} parent=1 // pred_fallthru
      _
    // Predicated region
    $region58: #{tpu_custom_call.1} parent=1 // pred_check
      _
    $region59: #{tpu_custom_call.1} parent=1 // pred_check_branch
      %145 = sbr.rel (0) target = $region61
    $region60: #{tpu_custom_call.1} parent=1 // pred_region
      %147 = dma.done [#allocation3], 256
    $region61: #{tpu_custom_call.1} parent=1 // pred_fallthru
      _
    // Predicated region
    $region62: #{tpu_custom_call.1} parent=1 // pred_check
      _
    $region63: #{tpu_custom_call.1} parent=1 // pred_check_branch
      %149 = sbr.rel (0) target = $region65
    $region64: #{tpu_custom_call.1} parent=1 // pred_region
      %151 = dma.done [#allocation6], 256
    $region65: #{tpu_custom_call.1} parent=1 // pred_fallthru
      _
    // Predicated region
    $region66: #{tpu_custom_call.1} parent=1 // pred_check
      _
    $region67: #{tpu_custom_call.1} parent=1 // pred_check_branch
      %153 = sbr.rel (0) target = $region69
    $region68: #{tpu_custom_call.1} parent=1 // pred_region
      %155 = dma.done [#allocation6], 512
    $region69: #{tpu_custom_call.1} parent=1 // pred_fallthru
      _
    // Predicated region
    $region70: #{tpu_custom_call.1} parent=1 // pred_check
      _
    $region71: #{tpu_custom_call.1} parent=1 // pred_check_branch
      %157 = sbr.rel (0) target = $region73
    $region72: #{tpu_custom_call.1} parent=1 // pred_region
      %159 = dma.done [#allocation9], 512
    $region73: #{tpu_custom_call.1} parent=1 // pred_fallthru
      _
    // Predicated region
    $region74: #{tpu_custom_call.1} parent=1 // pred_check
      _
    $region75: #{tpu_custom_call.1} parent=1 // pred_check_branch
      %161 = sbr.rel (0) target = $region77
    $region76: #{tpu_custom_call.1} parent=1 // pred_region
      %163 = dma.done [#allocation9], 512
    $region77: #{tpu_custom_call.1} parent=1 // pred_fallthru
      _
    // Predicated region
    $region78: #{tpu_custom_call.1} parent=1 // pred_check
      _
    $region79: #{tpu_custom_call.1} parent=1 // pred_check_branch
      %165 = sbr.rel (0) target = $region81
    $region80: #{tpu_custom_call.1} parent=1 // pred_region
      %167 = dma.done [#allocation12], 512
    $region81: #{tpu_custom_call.1} parent=1 // pred_fallthru
      _
    // Predicated region
    $region82: #{tpu_custom_call.1} parent=1 // pred_check
      _
    $region83: #{tpu_custom_call.1} parent=1 // pred_check_branch
      %169 = sbr.rel (0) target = $region85
    $region84: #{tpu_custom_call.1} parent=1 // pred_region
      %171 = dma.done [#allocation12], 512
    $region85: #{tpu_custom_call.1} parent=1 // pred_fallthru
      _
    // Predicated region
    $region86: #{tpu_custom_call.1} parent=1 // pred_check
      _
    $region87: #{tpu_custom_call.1} parent=1 // pred_check_branch
      %173 = sbr.rel (0) target = $region89
    $region88: #{tpu_custom_call.1} parent=1 // pred_region
      %175 = dma.done [#allocation15], 512
    $region89: #{tpu_custom_call.1} parent=1 // pred_fallthru
      _
    %v176 = vld [vmem:[%s12] sm:$0x1]
    %v177 = vld [vmem:[%s13] sm:$0x1]
    %v178 = vld [vmem:[#allocation2] sm:$0xff]
    %v179 = vld [vmem:[#allocation2 + $0x8] sm:$0xff]
    %v180 = vld [vmem:[#allocation7] sm:$0xff]
    %v181 = vld [vmem:[#allocation7 + $0x8] sm:$0xff]
    %v182 = vld [vmem:[#allocation7 + $0x10] sm:$0xff]
    %v183 = vld [vmem:[#allocation7 + $0x18] sm:$0xff]
    %vm184 = vcmask 261120
    %v186 = vsel %vm184, %v178, 0
    %v189 = vsel %vm184, %v179, 0
    %191 = vmatpush.msra.mxu0 0.0
    %192 = vmatpush.msra.mxu0 0.0
    %193 = vmatpush.msra.mxu0 0.0
    %194 = vmatpush.msra.mxu0 0.0
    %195 = vmatpush.msra.mxu0 0.0
    %196 = vmatpush.msra.mxu0 0.0
    %197 = vmatpush.msra.mxu0 0.0
    %198 = vmatpush.msra.mxu0 0.0
    %199 = vmatpush.msra.mxu0 0.0
    %200 = vmatpush.msra.mxu0 0.0
    %201 = vmatpush.msra.mxu0 0.0
    %202 = vmatpush.msra.mxu0 0.0
    %203 = vmatpush.msra.mxu0 %v183
    %204 = vmatpush.msra.mxu0 %v182
    %205 = vmatpush.msra.mxu0 %v181
    %206 = vmatpush.msra.mxu0 %v180
    %207 = vmatmul.f32.gmra.mxu0 %v186
    %v208 = vpop.f32.mrf.mxu0
    %v209 = vadd.f32 0.0, %v208
    %210 = vmatmul.f32.gmra.mxu0 %v189
    %v211 = vpop.f32.mrf.mxu0
    %v212 = vadd.f32 0.0, %v211
    %213 = vdwg.mxu0
    %v214 = vld [vmem:[#allocation10] sm:$0xff]
    %v215 = vld [vmem:[#allocation10 + $0x8] sm:$0xff]
    %v216 = vld [vmem:[#allocation10 + $0x10] sm:$0xff]
    %v217 = vld [vmem:[#allocation10 + $0x18] sm:$0xff]
    %v218 = vld [vmem:[%s5] sm:$0x1]
    %v220 = vperm.slane %v218, 0
    %v223 = vsel %vm184, %v209, 0
    %v226 = vsel %vm184, %v212, 0
    %228 = vmatpush.msra.mxu0 0.0
    %229 = vmatpush.msra.mxu0 0.0
    %230 = vmatpush.msra.mxu0 0.0
    %231 = vmatpush.msra.mxu0 0.0
    %232 = vmatpush.msra.mxu0 0.0
    %233 = vmatpush.msra.mxu0 0.0
    %234 = vmatpush.msra.mxu0 0.0
    %235 = vmatpush.msra.mxu0 0.0
    %236 = vmatpush.msra.mxu0 0.0
    %237 = vmatpush.msra.mxu0 0.0
    %238 = vmatpush.msra.mxu0 0.0
    %239 = vmatpush.msra.mxu0 0.0
    %240 = vmatpush.msra.mxu0 %v217
    %241 = vmatpush.msra.mxu0 %v216
    %242 = vmatpush.msra.mxu0 %v215
    %243 = vmatpush.msra.mxu0 %v214
    %244 = vmatmul.f32.gmra.mxu0 %v223
    %v245 = vpop.f32.mrf.mxu0
    %v246 = vadd.f32 %v220, %v245
    %247 = vmatmul.f32.gmra.mxu0 %v226
    %v248 = vpop.f32.mrf.mxu0
    %v249 = vadd.f32 %v220, %v248
    %250 = vdwg.mxu0
    %v251 = vmax.f32 %v246, 0.0
    %v252 = vmax.f32 %v249, 0.0
    %v253 = vld [vmem:[#allocation11] sm:$0xff]
    %v254 = vld [vmem:[#allocation11 + $0x8] sm:$0xff]
    %v255 = vld [vmem:[#allocation11 + $0x10] sm:$0xff]
    %v256 = vld [vmem:[#allocation11 + $0x18] sm:$0xff]
    %v257 = vld [vmem:[%s7] sm:$0x1]
    %v259 = vperm.slane %v257, 0
    %v262 = vsel %vm184, %v251, 0
    %v265 = vsel %vm184, %v252, 0
    %267 = vmatpush.msra.mxu0 0.0
    %268 = vmatpush.msra.mxu0 0.0
    %269 = vmatpush.msra.mxu0 0.0
    %270 = vmatpush.msra.mxu0 0.0
    %271 = vmatpush.msra.mxu0 0.0
    %272 = vmatpush.msra.mxu0 0.0
    %273 = vmatpush.msra.mxu0 0.0
    %274 = vmatpush.msra.mxu0 0.0
    %275 = vmatpush.msra.mxu0 0.0
    %276 = vmatpush.msra.mxu0 0.0
    %277 = vmatpush.msra.mxu0 0.0
    %278 = vmatpush.msra.mxu0 0.0
    %279 = vmatpush.msra.mxu0 %v256
    %280 = vmatpush.msra.mxu0 %v255
    %281 = vmatpush.msra.mxu0 %v254
    %282 = vmatpush.msra.mxu0 %v253
    %283 = vmatmul.f32.gmra.mxu0 %v262
    %v284 = vpop.f32.mrf.mxu0
    %v285 = vadd.f32 %v259, %v284
    %286 = vmatmul.f32.gmra.mxu0 %v265
    %v287 = vpop.f32.mrf.mxu0
    %v288 = vadd.f32 %v259, %v287
    %289 = vdwg.mxu0
    %v290 = vadd.f32 %v285, %v209
    %v291 = vadd.f32 %v288, %v212
    %v292 = vsel %vm184, %v290, 0.0
    %293 = vadd.xlane.f32.xlu0 %v292
    %v294 = vpop.xlane.xlu0 %293
    %v295 = vsel %vm184, %v291, 0.0
    %296 = vadd.xlane.f32.xlu0 %v295
    %v297 = vpop.xlane.xlu0 %296
    %v298 = vrcp.pop 32.0
    %v299 = vmul.f32 32.0, %v298
    %v300 = vsub.f32 1.0, %v299
    %v301 = vmul.f32 %v298, %v300
    %v302 = vadd.f32 %v298, %v301
    %vm303 = vweird.f32 %v298
    %v304 = vsel %vm303, %v298, %v302
    %v305 = vmul.f32 %v294, %v304
    %v306 = vmul.f32 %v297, %v304
    %v307 = vsub.f32 %v290, %v305
    %v308 = vsub.f32 %v291, %v306
    %v309 = vmul.f32 %v307, %v307
    %v310 = vmul.f32 %v308, %v308
    %v311 = vsel %vm184, %v309, 0.0
    %312 = vadd.xlane.f32.xlu0 %v311
    %v313 = vpop.xlane.xlu0 %312
    %v314 = vsel %vm184, %v310, 0.0
    %315 = vadd.xlane.f32.xlu0 %v314
    %v316 = vpop.xlane.xlu0 %315
    %v317 = vmul.f32 %v313, %v304
    %v318 = vmul.f32 %v316, %v304
    %v319 = vadd.f32 %v317, 1e-06
    %v320 = vadd.f32 %v318, 1e-06
    %v321 = vrsqrt.pop %v319
    %v322 = vmul.f32 %v321, %v319
    %v323 = vmul.f32 %v322, %v321
    %v324 = vmul.f32 0.5, %v323
    %v325 = vsub.f32 1.5, %v324
    %v326 = vmul.f32 %v321, %v325
    %vm327 = vweird.f32 %v319
    %vm328 = vweird.f32 %v321
    %vm329 = vmor %vm327, %vm328
    %v330 = vsel %vm329, %v321, %v326
    %v331 = vrsqrt.pop %v320
    %v332 = vmul.f32 %v331, %v320
    %v333 = vmul.f32 %v332, %v331
    %v334 = vmul.f32 0.5, %v333
    %v335 = vsub.f32 1.5, %v334
    %v336 = vmul.f32 %v331, %v335
    %vm337 = vweird.f32 %v320
    %vm338 = vweird.f32 %v331
    %vm339 = vmor %vm337, %vm338
    %v340 = vsel %vm339, %v331, %v336
    %v341 = vmul.f32 %v307, %v330
    %v342 = vmul.f32 %v308, %v340
    %v344 = vperm.slane %v176, 0
    %v346 = vmul.f32 %v341, %v344
    %v347 = vmul.f32 %v342, %v344
    %v349 = vperm.slane %v177, 0
    %v351 = vadd.f32 %v346, %v349
    %v352 = vadd.f32 %v347, %v349
    %353 = vst.msk [vmem:[#allocation16] sm:$0xff] %vm184, %v351
    %354 = vst.msk [vmem:[#allocation16 + $0x8] sm:$0xff] %vm184, %v352
    %v355 = vld [vmem:[#allocation5] sm:$0xff]
    %v356 = vld [vmem:[#allocation5 + $0x8] sm:$0xff]
    %v357 = vld [vmem:[#allocation8] sm:$0xff]
    %v358 = vld [vmem:[#allocation8 + $0x8] sm:$0xff]
    %v359 = vld [vmem:[#allocation8 + $0x10] sm:$0xff]
    %v360 = vld [vmem:[#allocation8 + $0x18] sm:$0xff]
    %v362 = vsel %vm184, %v355, 0
    %v365 = vsel %vm184, %v356, 0
    %367 = vmatpush.msra.mxu0 0.0
    %368 = vmatpush.msra.mxu0 0.0
    %369 = vmatpush.msra.mxu0 0.0
    %370 = vmatpush.msra.mxu0 0.0
    %371 = vmatpush.msra.mxu0 0.0
    %372 = vmatpush.msra.mxu0 0.0
    %373 = vmatpush.msra.mxu0 0.0
    %374 = vmatpush.msra.mxu0 0.0
    %375 = vmatpush.msra.mxu0 0.0
    %376 = vmatpush.msra.mxu0 0.0
    %377 = vmatpush.msra.mxu0 0.0
    %378 = vmatpush.msra.mxu0 0.0
    %379 = vmatpush.msra.mxu0 %v360
    %380 = vmatpush.msra.mxu0 %v359
    %381 = vmatpush.msra.mxu0 %v358
    %382 = vmatpush.msra.mxu0 %v357
    %383 = vmatmul.f32.gmra.mxu0 %v362
    %v384 = vpop.f32.mrf.mxu0
    %v385 = vadd.f32 0.0, %v384
    %386 = vmatmul.f32.gmra.mxu0 %v365
    %v387 = vpop.f32.mrf.mxu0
    %v388 = vadd.f32 0.0, %v387
    %389 = vdwg.mxu0
    %v390 = vld [vmem:[#allocation13] sm:$0xff]
    %v391 = vld [vmem:[#allocation13 + $0x8] sm:$0xff]
    %v392 = vld [vmem:[#allocation13 + $0x10] sm:$0xff]
    %v393 = vld [vmem:[#allocation13 + $0x18] sm:$0xff]
    %v394 = vld [vmem:[%s9] sm:$0x1]
    %v396 = vperm.slane %v394, 0
    %v399 = vsel %vm184, %v385, 0
    %v402 = vsel %vm184, %v388, 0
    %404 = vmatpush.msra.mxu0 0.0
    %405 = vmatpush.msra.mxu0 0.0
    %406 = vmatpush.msra.mxu0 0.0
    %407 = vmatpush.msra.mxu0 0.0
    %408 = vmatpush.msra.mxu0 0.0
    %409 = vmatpush.msra.mxu0 0.0
    %410 = vmatpush.msra.mxu0 0.0
    %411 = vmatpush.msra.mxu0 0.0
    %412 = vmatpush.msra.mxu0 0.0
    %413 = vmatpush.msra.mxu0 0.0
    %414 = vmatpush.msra.mxu0 0.0
    %415 = vmatpush.msra.mxu0 0.0
    %416 = vmatpush.msra.mxu0 %v393
    %417 = vmatpush.msra.mxu0 %v392
    %418 = vmatpush.msra.mxu0 %v391
    %419 = vmatpush.msra.mxu0 %v390
    %420 = vmatmul.f32.gmra.mxu0 %v399
    %v421 = vpop.f32.mrf.mxu0
    %v422 = vadd.f32 %v396, %v421
    %423 = vmatmul.f32.gmra.mxu0 %v402
    %v424 = vpop.f32.mrf.mxu0
    %v425 = vadd.f32 %v396, %v424
    %426 = vdwg.mxu0
    %v427 = vmax.f32 %v422, 0.0
    %v428 = vmax.f32 %v425, 0.0
    %v429 = vld [vmem:[#allocation14] sm:$0xff]
    %v430 = vld [vmem:[#allocation14 + $0x8] sm:$0xff]
    %v431 = vld [vmem:[#allocation14 + $0x10] sm:$0xff]
    %v432 = vld [vmem:[#allocation14 + $0x18] sm:$0xff]
    %v433 = vld [vmem:[%s11] sm:$0x1]
    %v435 = vperm.slane %v433, 0
    %v438 = vsel %vm184, %v427, 0
    %v441 = vsel %vm184, %v428, 0
    %443 = vmatpush.msra.mxu0 0.0
    %444 = vmatpush.msra.mxu0 0.0
    %445 = vmatpush.msra.mxu0 0.0
    %446 = vmatpush.msra.mxu0 0.0
    %447 = vmatpush.msra.mxu0 0.0
    %448 = vmatpush.msra.mxu0 0.0
    %449 = vmatpush.msra.mxu0 0.0
    %450 = vmatpush.msra.mxu0 0.0
    %451 = vmatpush.msra.mxu0 0.0
    %452 = vmatpush.msra.mxu0 0.0
    %453 = vmatpush.msra.mxu0 0.0
    %454 = vmatpush.msra.mxu0 0.0
    %455 = vmatpush.msra.mxu0 %v432
    %456 = vmatpush.msra.mxu0 %v431
    %457 = vmatpush.msra.mxu0 %v430
    %458 = vmatpush.msra.mxu0 %v429
    %459 = vmatmul.f32.gmra.mxu0 %v438
    %v460 = vpop.f32.mrf.mxu0
    %v461 = vadd.f32 %v435, %v460
    %462 = vmatmul.f32.gmra.mxu0 %v441
    %v463 = vpop.f32.mrf.mxu0
    %v464 = vadd.f32 %v435, %v463
    %465 = vdwg.mxu0
    %v466 = vadd.f32 %v461, %v385
    %v467 = vadd.f32 %v464, %v388
    %v468 = vsel %vm184, %v466, 0.0
    %469 = vadd.xlane.f32.xlu0 %v468
    %v470 = vpop.xlane.xlu0 %469
    %v471 = vsel %vm184, %v467, 0.0
    %472 = vadd.xlane.f32.xlu0 %v471
    %v473 = vpop.xlane.xlu0 %472
    %v474 = vmul.f32 %v470, %v304
    %v475 = vmul.f32 %v473, %v304
    %v476 = vsub.f32 %v466, %v474
    %v477 = vsub.f32 %v467, %v475
    %v478 = vmul.f32 %v476, %v476
    %v479 = vmul.f32 %v477, %v477
    %v480 = vsel %vm184, %v478, 0.0
    %481 = vadd.xlane.f32.xlu0 %v480
    %v482 = vpop.xlane.xlu0 %481
    %v483 = vsel %vm184, %v479, 0.0
    %484 = vadd.xlane.f32.xlu0 %v483
    %v485 = vpop.xlane.xlu0 %484
    %v486 = vmul.f32 %v482, %v304
    %v487 = vmul.f32 %v485, %v304
    %v488 = vadd.f32 %v486, 1e-06
    %v489 = vadd.f32 %v487, 1e-06
    %v490 = vrsqrt.pop %v488
    %v491 = vmul.f32 %v490, %v488
    %v492 = vmul.f32 %v491, %v490
    %v493 = vmul.f32 0.5, %v492
    %v494 = vsub.f32 1.5, %v493
    %v495 = vmul.f32 %v490, %v494
    %vm496 = vweird.f32 %v488
    %vm497 = vweird.f32 %v490
    %vm498 = vmor %vm496, %vm497
    %v499 = vsel %vm498, %v490, %v495
    %v500 = vrsqrt.pop %v489
    %v501 = vmul.f32 %v500, %v489
    %v502 = vmul.f32 %v501, %v500
    %v503 = vmul.f32 0.5, %v502
    %v504 = vsub.f32 1.5, %v503
    %v505 = vmul.f32 %v500, %v504
    %vm506 = vweird.f32 %v489
    %vm507 = vweird.f32 %v500
    %vm508 = vmor %vm506, %vm507
    %v509 = vsel %vm508, %v500, %v505
    %v510 = vmul.f32 %v476, %v499
    %v511 = vmul.f32 %v477, %v509
    %v512 = vmul.f32 %v510, %v344
    %v513 = vmul.f32 %v511, %v344
    %v514 = vadd.f32 %v512, %v349
    %v515 = vadd.f32 %v513, %v349
    %516 = vst.msk [vmem:[#allocation17] sm:$0xff] %vm184, %v514
    %517 = vst.msk [vmem:[#allocation17 + $0x8] sm:$0xff] %vm184, %v515
    // Predicated region
    $region90: #{tpu_custom_call.1} parent=1 // pred_check
      _
    $region91: #{tpu_custom_call.1} parent=1 // pred_check_branch
      %519 = sbr.rel (0) target = $region93
    $region92: #{tpu_custom_call.1} parent=1 // pred_region
      %521 = vsyncadd [#allocation4], 0
      %s522 = sshll.u32 [#allocation16], 4
      %s523 = int_to_ptr.vmem [resolvable:$true] %s522
      %s524 = sshll.u32 %s14, 4
      %s525 = int_to_ptr.hbm [resolvable:$true] %s524
      %530 = dma.vmem_to_hbm [thread:$0]  %s523, 256, %s525, [#allocation4], 128, 128, 8
    $region93: #{tpu_custom_call.1} parent=1 // pred_fallthru
      _
    // Predicated region
    $region94: #{tpu_custom_call.1} parent=1 // pred_check
      _
    $region95: #{tpu_custom_call.1} parent=1 // pred_check_branch
      %532 = sbr.rel (0) target = $region97
    $region96: #{tpu_custom_call.1} parent=1 // pred_region
      %534 = vsyncadd [#allocation18], 0
      %s535 = sshll.u32 [#allocation17], 4
      %s536 = int_to_ptr.vmem [resolvable:$true] %s535
      %s537 = sshll.u32 %s15, 4
      %s538 = int_to_ptr.hbm [resolvable:$true] %s537
      %543 = dma.vmem_to_hbm [thread:$0]  %s536, 256, %s538, [#allocation18], 128, 128, 8
    $region97: #{tpu_custom_call.1} parent=1 // pred_fallthru
      _
    // Predicated region
    $region98: #{tpu_custom_call.1} parent=1 // pred_check
      _
    $region99: #{tpu_custom_call.1} parent=1 // pred_check_branch
      %545 = sbr.rel (0) target = $region101
    $region100: #{tpu_custom_call.1} parent=1 // pred_region
      %547 = dma.done [#allocation4], 256
    $region101: #{tpu_custom_call.1} parent=1 // pred_fallthru
      _
    // Predicated region
    $region102: #{tpu_custom_call.1} parent=1 // pred_check
      _
    $region103: #{tpu_custom_call.1} parent=1 // pred_check_branch
      %549 = sbr.rel (0) target = $region105
    $region104: #{tpu_custom_call.1} parent=1 // pred_region
      %551 = dma.done [#allocation18], 256
    $region105: #{tpu_custom_call.1} parent=1 // pred_fallthru
      _
    %552 = vsyncpa [#allocation3], 1
    %553 = vsyncpa [#allocation6], 1
    %554 = vsyncpa [#allocation9], 1
    %555 = vsyncpa [#allocation12], 1
    %556 = vsyncpa [#allocation15], 1
    %557 = vsyncpa [#allocation4], 1
    %558 = vsyncpa [#allocation18], 1

</llo_original>
